<compile_context>
chip_gen: v5e
topology: v5e:2x2
jax: 0.10.0
libtpu: 0.0.40
codegen_flags: <defaults>
</compile_context>

<pallas_src>
import math
import jax
import jax.numpy as jnp
from jax.experimental import pallas as pl
from jax.experimental.pallas import tpu as pltpu


def _round_up(x, m):
    return ((x + m - 1) // m) * m


# ----------------------------------------------------------------------------
# Kernel bodies
# ----------------------------------------------------------------------------
def _linear_kernel_resident(x_ref, w_ref, b_ref, o_ref):
    # x_ref: (tm, Kp), w_ref: (Kp, Np), b_ref: (1, Np), o_ref: (tm, Np)
    acc = jnp.dot(x_ref[...], w_ref[...], preferred_element_type=jnp.float32)
    o_ref[...] = (acc + b_ref[...].astype(jnp.float32)).astype(o_ref.dtype)


def _linear_kernel_tiled(x_ref, w_ref, b_ref, o_ref, acc_ref):
    # x_ref: (tm, tk), w_ref: (tk, tn), b_ref: (1, tn), o_ref: (tm, tn)
    k = pl.program_id(2)

    @pl.when(k == 0)
    def _():
        acc_ref[...] = jnp.zeros_like(acc_ref)

    acc_ref[...] += jnp.dot(x_ref[...], w_ref[...],
                            preferred_element_type=jnp.float32)

    @pl.when(k == pl.num_programs(2) - 1)
    def _():
        o_ref[...] = (acc_ref[...] + b_ref[...].astype(jnp.float32)).astype(o_ref.dtype)


# ----------------------------------------------------------------------------
# Wrapper
# ----------------------------------------------------------------------------
def custom_linear(x, weight, bias=None, *, max_tm=512, max_tn=512, max_tk=512):
    """y = x @ weight.T + bias  (F.linear semantics).

    weight: (out_channels, in_channels) PyTorch layout; bias: (out_channels,) or None.
    x may have any leading shape (..., in_channels). Ragged M and
    non-128-multiple K/N are handled by wrapper padding.
    """
    lead_shape = x.shape[:-1]
    K = x.shape[-1]
    N, K2 = weight.shape
    assert K == K2, "in_channels mismatch"

    dtype = jnp.promote_types(x.dtype, weight.dtype)
    x2 = x.reshape(-1, K).astype(dtype)
    M = x2.shape[0]
    wt = weight.astype(dtype).T                 # (K, N): transpose once, outside kernel
    if bias is None:
        bias = jnp.zeros((N,), dtype=dtype)
    b2d = bias.astype(dtype).reshape(1, N)

    # Lane-dense padding: last dims to multiples of 128, rows to a multiple of tm.
    Kp = _round_up(K, 128)
    Np = _round_up(N, 128)
    tm = min(max_tm, _round_up(max(M, 1), 8))
    Mp = _round_up(max(M, 1), tm)

    if (Mp, Kp) != (M, K):
        x2 = jnp.pad(x2, ((0, Mp - M), (0, Kp - K)))
    if (Kp, Np) != (K, N):
        wt = jnp.pad(wt, ((0, Kp - K), (0, Np - N)))
    if Np != N:
        b2d = jnp.pad(b2d, ((0, 0), (0, Np - N)))

    itemsize = jnp.dtype(dtype).itemsize
    cost = pl.CostEstimate(
        flops=2 * M * N * K,
        transcendentals=0,
        bytes_accessed=itemsize * (M * K + K * N + N + M * N),
    )

    # Path selection: keep the whole weight resident in VMEM when it is small
    # enough (the comenet layers are tiny); otherwise tile over N and K.
    resident_ok = itemsize * Kp * Np <= 8 * 1024 * 1024

    if resident_ok:
        vmem_needed = itemsize * (2 * tm * Kp + 2 * tm * Np + 2 * Kp * Np + 2 * Np)
        vmem_limit = int(min(64 * 1024 * 1024,
                             max(2 * vmem_needed, 16 * 1024 * 1024)))
        out = pl.pallas_call(
            _linear_kernel_resident,
            out_shape=jax.ShapeDtypeStruct((Mp, Np), dtype),
            grid_spec=pltpu.PrefetchScalarGridSpec(
                num_scalar_prefetch=0,
                grid=(Mp // tm,),
                in_specs=[
                    pl.BlockSpec((tm, Kp), lambda i: (i, 0)),   # streamed x row tile
                    pl.BlockSpec((Kp, Np), lambda i: (0, 0)),   # resident weight
                    pl.BlockSpec((1, Np), lambda i: (0, 0)),    # resident bias row
                ],
                out_specs=pl.BlockSpec((tm, Np), lambda i: (i, 0)),
            ),
            compiler_params=pltpu.CompilerParams(
                dimension_semantics=("parallel",),
                vmem_limit_bytes=vmem_limit,
            ),
            cost_estimate=cost,
        )(x2, wt, b2d)
    else:
        tn = min(max_tn, Np)
        tk = min(max_tk, Kp)
        Np2 = _round_up(Np, tn)
        Kp2 = _round_up(Kp, tk)
        if (Kp2, Np2) != (Kp, Np):
            wt = jnp.pad(wt, ((0, Kp2 - Kp), (0, Np2 - Np)))
            b2d = jnp.pad(b2d, ((0, 0), (0, Np2 - Np)))
            x2 = jnp.pad(x2, ((0, 0), (0, Kp2 - Kp)))
            Kp, Np = Kp2, Np2

        vmem_needed = (itemsize * 2 * (tm * tk + tk * tn + tm * tn + tn)
                       + 4 * tm * tn)
        vmem_limit = int(min(64 * 1024 * 1024,
                             max(2 * vmem_needed, 16 * 1024 * 1024)))
        out = pl.pallas_call(
            _linear_kernel_tiled,
            out_shape=jax.ShapeDtypeStruct((Mp, Np), dtype),
            grid_spec=pltpu.PrefetchScalarGridSpec(
                num_scalar_prefetch=0,
                grid=(Mp // tm, Np // tn, Kp // tk),
                in_specs=[
                    pl.BlockSpec((tm, tk), lambda i, j, k: (i, k)),
                    pl.BlockSpec((tk, tn), lambda i, j, k: (k, j)),
                    pl.BlockSpec((1, tn), lambda i, j, k: (0, j)),
                ],
                out_specs=pl.BlockSpec((tm, tn), lambda i, j, k: (i, j)),
                scratch_shapes=[pltpu.VMEM((tm, tn), jnp.float32)],
            ),
            compiler_params=pltpu.CompilerParams(
                dimension_semantics=("parallel", "parallel", "arbitrary"),
                vmem_limit_bytes=vmem_limit,
            ),
            cost_estimate=cost,
        )(x2, wt, b2d)

    return out[:M, :N].reshape(*lead_shape, N)


def glorot_uniform(key, out_channels, in_channels, dtype=jnp.float32):
    # torch_geometric inits.glorot: uniform(-a, a), a = sqrt(6 / (fan_in + fan_out))
    a = math.sqrt(6.0 / (in_channels + out_channels))
    return jax.random.uniform(
        key, (out_channels, in_channels), dtype=dtype, minval=-a, maxval=a
    )


if __name__ == "__main__":
    in_channels = 32
    out_channels = 64
    M = 16  # number of input rows (e.g. nodes / edges in comenet)

    key = jax.random.PRNGKey(0)
    kx, kw = jax.random.split(key)

    x = jax.random.normal(kx, (M, in_channels), dtype=jnp.float32)
    weight = glorot_uniform(kw, out_channels, in_channels)  # (out, in)
    bias = jnp.zeros((out_channels,), dtype=jnp.float32)    # 'zeros' init

    y = custom_linear(x, weight, bias)
    y = jax.block_until_ready(y)

    # Reference check against plain-JAX F.linear semantics.
    y_ref = x @ weight.T + bias
    assert y.shape == (M, out_channels)
    assert jnp.allclose(y, y_ref, atol=1e-5, rtol=1e-5)

    print("KERNEL_OK")
</pallas_src>

<mosaic_0001>
module attributes {stable_mosaic.version = 11 : i64} {
  func.func @_linear_kernel_resident(%arg0: i32, %arg1: memref<16x128xf32, #tpu.memory_space<vmem>>, %arg2: memref<128x128xf32, #tpu.memory_space<vmem>>, %arg3: memref<1x128xf32, #tpu.memory_space<vmem>>, %arg4: memref<16x128xf32, #tpu.memory_space<vmem>>) attributes {dimension_semantics = [#tpu.dimension_semantics<parallel>], iteration_bounds = array<i64: 1>, scalar_prefetch = 0 : i64, scratch_operands = 0 : i64, tpu.core_type = #tpu.core_type<tc>, window_params = [{transform_indices = @transform_0, window_bounds = array<i64: 16, 128>}, {pipeline_mode = #tpu.pipeline_mode<synchronous>, transform_indices = @transform_1, window_bounds = array<i64: 128, 128>}, {pipeline_mode = #tpu.pipeline_mode<synchronous>, transform_indices = @transform_2, window_bounds = array<i64: 1, 128>}, {transform_indices = @transform_3, window_bounds = array<i64: 16, 128>}]} {
    %c0 = arith.constant 0 : index
    %c0_0 = arith.constant 0 : index
    %0 = vector.load %arg1[%c0, %c0_0] : memref<16x128xf32, #tpu.memory_space<vmem>>, vector<16x128xf32>
    %c0_1 = arith.constant 0 : index
    %c0_2 = arith.constant 0 : index
    %1 = vector.load %arg2[%c0_1, %c0_2] : memref<128x128xf32, #tpu.memory_space<vmem>>, vector<128x128xf32>
    %cst = arith.constant dense<0.000000e+00> : vector<16x128xf32>
    %2 = tpu.matmul %0, %1, %cst {dimension_numbers = #tpu.dot_dimension_numbers<[1], [0], [0], [1], [0, 0, 1, 1], [], []>} : vector<16x128xf32>, vector<128x128xf32>, vector<16x128xf32> -> vector<16x128xf32>
    %c0_3 = arith.constant 0 : index
    %c0_4 = arith.constant 0 : index
    %3 = vector.load %arg3[%c0_3, %c0_4] : memref<1x128xf32, #tpu.memory_space<vmem>>, vector<1x128xf32>
    %4 = vector.broadcast %3 : vector<1x128xf32> to vector<16x128xf32>
    %5 = arith.addf %2, %4 : vector<16x128xf32>
    %c0_5 = arith.constant 0 : index
    %c0_6 = arith.constant 0 : index
    %6 = vector.load %arg4[%c0_5, %c0_6] : memref<16x128xf32, #tpu.memory_space<vmem>>, vector<16x128xf32>
    tpu.vector_store %arg4[%c0_5, %c0_6], %5 {strides = array<i32>} : memref<16x128xf32, #tpu.memory_space<vmem>>, vector<16x128xf32>,
    return
  }
  func.func @transform_0(%arg0: i32) -> (i32, i32) {
    %c0_i32 = arith.constant 0 : i32
    %c0_i32_0 = arith.constant 0 : i32
    return %arg0, %c0_i32 : i32, i32
  }
  func.func @transform_1(%arg0: i32) -> (i32, i32) {
    %c0_i32 = arith.constant 0 : i32
    %c0_i32_0 = arith.constant 0 : i32
    %c0_i32_1 = arith.constant 0 : i32
    return %c0_i32, %c0_i32_0 : i32, i32
  }
  func.func @transform_2(%arg0: i32) -> (i32, i32) {
    %c0_i32 = arith.constant 0 : i32
    %c0_i32_0 = arith.constant 0 : i32
    %c0_i32_1 = arith.constant 0 : i32
    return %c0_i32, %c0_i32_0 : i32, i32
  }
  func.func @transform_3(%arg0: i32) -> (i32, i32) {
    %c0_i32 = arith.constant 0 : i32
    %c0_i32_0 = arith.constant 0 : i32
    return %arg0, %c0_i32 : i32, i32
  }
}

</mosaic_0001>

<llo_original>
// kernel: tpu_custom_call.1
$region0: #{tpu_custom_call.1}
  #allocation0 [shape = 'u32[]', space=smem, size = 0x4, offset = 0x4, fixed_abs, tag = 'smem constant byte address 0x4 - core index']
  #allocation1 [shape = 'u32[72,128]{1,0:T(1,128)}', space=vmem, size = 0x9000, scoped, tag = 'internal scratch']
  %s0 = inlined_call_operand.hbm [shape: f32[16,128], index: 0, kind: input, shape index: {}]
  %s1 = inlined_call_operand.hbm [shape: f32[128,128], index: 1, kind: input, shape index: {}]
  %s2 = inlined_call_operand.vmem [shape: f32[1,128], index: 2, kind: input, shape index: {}]
  %s3 = inlined_call_operand.hbm [shape: f32[16,128], index: 3, kind: output, shape index: {}]
  %s4 = sld [smem:[#allocation0]]
  $region30: #{tpu_custom_call.1} parent=0
    _
  %s6 = ssub.s32 1, %s4
  %s7 = scalar_select 0, %s6, %s4
  $region1: #{tpu_custom_call.1} parent=0
    #allocation2 [shape = 'u8[8192]{0}', space=vmem, size = 0x2000, scoped, tag = 'input window, operand 0, single buffered']
    #allocation3 [shape = 's32[1]{0}', space=sflag, size = 0x4, scoped, tag = 'scoped memory for tpu_custom_call.1']
    #allocation4 [shape = 's32[1]{0}', space=sflag, size = 0x4, scoped, tag = 'scoped memory for tpu_custom_call.1']
    #allocation5 [shape = 'u8[65536]{0}', space=vmem, size = 0x10000, scoped, tag = 'input window, operand 1, single buffered']
    #allocation6 [shape = 's32[1]{0}', space=sflag, size = 0x4, scoped, tag = 'scoped memory for tpu_custom_call.1']
    #allocation7 [shape = 'u8[8192]{0}', space=vmem, size = 0x2000, scoped, tag = 'output window, operand 0, single buffered']
    %8 = vsyncpa [#allocation3], 0
    %9 = vsyncpa [#allocation6], 0
    %10 = vsyncpa [#allocation4], 0
    // Predicated region
    $region2: #{tpu_custom_call.1} parent=1 // pred_check
      _
    $region3: #{tpu_custom_call.1} parent=1 // pred_check_branch
      %12 = sbr.rel (0) target = $region5
    $region4: #{tpu_custom_call.1} parent=1 // pred_region
      %14 = vsyncadd [#allocation3], 0
      %s15 = sshll.u32 %s0, 4
      %s16 = int_to_ptr.hbm [resolvable:$true] %s15
      %s17 = sshll.u32 [#allocation2], 4
      %s18 = int_to_ptr.vmem [resolvable:$true] %s17
      %23 = dma.hbm_to_vmem [thread:$0]  %s16, 256, %s18, [#allocation3], 128, 128, 8
    $region5: #{tpu_custom_call.1} parent=1 // pred_fallthru
      _
    // Predicated region
    $region6: #{tpu_custom_call.1} parent=1 // pred_check
      _
    $region7: #{tpu_custom_call.1} parent=1 // pred_check_branch
      %25 = sbr.rel (0) target = $region9
    $region8: #{tpu_custom_call.1} parent=1 // pred_region
      %27 = vsyncadd [#allocation6], 0
      %s28 = sshll.u32 %s1, 4
      %s29 = int_to_ptr.hbm [resolvable:$true] %s28
      %s30 = sshll.u32 [#allocation5], 4
      %s31 = int_to_ptr.vmem [resolvable:$true] %s30
      %36 = dma.hbm_to_vmem [thread:$0]  %s29, 2048, %s31, [#allocation6], 128, 128, 8
    $region9: #{tpu_custom_call.1} parent=1 // pred_fallthru
      _
    // Predicated region
    $region10: #{tpu_custom_call.1} parent=1 // pred_check
      _
    $region11: #{tpu_custom_call.1} parent=1 // pred_check_branch
      %38 = sbr.rel (0) target = $region13
    $region12: #{tpu_custom_call.1} parent=1 // pred_region
      _
    $region13: #{tpu_custom_call.1} parent=1 // pred_fallthru
      _
    // Predicated region
    $region14: #{tpu_custom_call.1} parent=1 // pred_check
      _
    $region15: #{tpu_custom_call.1} parent=1 // pred_check_branch
      %40 = sbr.rel (0) target = $region17
    $region16: #{tpu_custom_call.1} parent=1 // pred_region
      %42 = dma.done [#allocation3], 256
    $region17: #{tpu_custom_call.1} parent=1 // pred_fallthru
      _
    // Predicated region
    $region18: #{tpu_custom_call.1} parent=1 // pred_check
      _
    $region19: #{tpu_custom_call.1} parent=1 // pred_check_branch
      %44 = sbr.rel (0) target = $region21
    $region20: #{tpu_custom_call.1} parent=1 // pred_region
      %46 = dma.done [#allocation6], 2048
    $region21: #{tpu_custom_call.1} parent=1 // pred_fallthru
      _
    %v47 = vld [vmem:[#allocation2] sm:$0xff]
    %v48 = vld [vmem:[#allocation2 + $0x8] sm:$0xff]
    %v49 = vld [vmem:[#allocation5] sm:$0xff]
    %v50 = vld [vmem:[#allocation5 + $0x8] sm:$0xff]
    %v51 = vld [vmem:[#allocation5 + $0x10] sm:$0xff]
    %v52 = vld [vmem:[#allocation5 + $0x18] sm:$0xff]
    %v53 = vld [vmem:[#allocation5 + $0x20] sm:$0xff]
    %v54 = vld [vmem:[#allocation5 + $0x28] sm:$0xff]
    %v55 = vld [vmem:[#allocation5 + $0x30] sm:$0xff]
    %v56 = vld [vmem:[#allocation5 + $0x38] sm:$0xff]
    %v57 = vld [vmem:[#allocation5 + $0x40] sm:$0xff]
    %v58 = vld [vmem:[#allocation5 + $0x48] sm:$0xff]
    %v59 = vld [vmem:[#allocation5 + $0x50] sm:$0xff]
    %v60 = vld [vmem:[#allocation5 + $0x58] sm:$0xff]
    %v61 = vld [vmem:[#allocation5 + $0x60] sm:$0xff]
    %v62 = vld [vmem:[#allocation5 + $0x68] sm:$0xff]
    %v63 = vld [vmem:[#allocation5 + $0x70] sm:$0xff]
    %v64 = vld [vmem:[#allocation5 + $0x78] sm:$0xff]
    %v65 = vld [vmem:[%s2] sm:$0x1]
    %v67 = vperm.slane %v65, 0
    %69 = vmatpush.msra.mxu0 %v64
    %70 = vmatpush.msra.mxu0 %v63
    %71 = vmatpush.msra.mxu0 %v62
    %72 = vmatpush.msra.mxu0 %v61
    %73 = vmatpush.msra.mxu0 %v60
    %74 = vmatpush.msra.mxu0 %v59
    %75 = vmatpush.msra.mxu0 %v58
    %76 = vmatpush.msra.mxu0 %v57
    %77 = vmatpush.msra.mxu0 %v56
    %78 = vmatpush.msra.mxu0 %v55
    %79 = vmatpush.msra.mxu0 %v54
    %80 = vmatpush.msra.mxu0 %v53
    %81 = vmatpush.msra.mxu0 %v52
    %82 = vmatpush.msra.mxu0 %v51
    %83 = vmatpush.msra.mxu0 %v50
    %84 = vmatpush.msra.mxu0 %v49
    %85 = vmatmul.f32.gmra.mxu0 %v47
    %v86 = vpop.f32.mrf.mxu0
    %v87 = vadd.f32 %v67, %v86
    %88 = vmatmul.f32.gmra.mxu0 %v48
    %v89 = vpop.f32.mrf.mxu0
    %v90 = vadd.f32 %v67, %v89
    %91 = vdwg.mxu0
    %92 = vst [vmem:[#allocation7] sm:$0xff] %v87
    %93 = vst [vmem:[#allocation7 + $0x8] sm:$0xff] %v90
    // Predicated region
    $region22: #{tpu_custom_call.1} parent=1 // pred_check
      _
    $region23: #{tpu_custom_call.1} parent=1 // pred_check_branch
      %95 = sbr.rel (0) target = $region25
    $region24: #{tpu_custom_call.1} parent=1 // pred_region
      %97 = vsyncadd [#allocation4], 0
      %s98 = sshll.u32 [#allocation7], 4
      %s99 = int_to_ptr.vmem [resolvable:$true] %s98
      %s100 = sshll.u32 %s3, 4
      %s101 = int_to_ptr.hbm [resolvable:$true] %s100
      %106 = dma.vmem_to_hbm [thread:$0]  %s99, 256, %s101, [#allocation4], 128, 128, 8
    $region25: #{tpu_custom_call.1} parent=1 // pred_fallthru
      _
    // Predicated region
    $region26: #{tpu_custom_call.1} parent=1 // pred_check
      _
    $region27: #{tpu_custom_call.1} parent=1 // pred_check_branch
      %108 = sbr.rel (0) target = $region29
    $region28: #{tpu_custom_call.1} parent=1 // pred_region
      %110 = dma.done [#allocation4], 256
    $region29: #{tpu_custom_call.1} parent=1 // pred_fallthru
      _
    %111 = vsyncpa [#allocation3], 1
    %112 = vsyncpa [#allocation6], 1
    %113 = vsyncpa [#allocation4], 1

</llo_original>
